<compile_context>
chip_gen: v7x
topology: tpu7x:2x2x1
jax: 0.10.0
libtpu: 0.0.40
codegen_flags: <defaults>
</compile_context>

<pallas_src>
import jax
import jax.numpy as jnp
from jax.experimental import pallas as pl
from jax.experimental.pallas import tpu as pltpu


def _round_up(n, m):
    return ((n + m - 1) // m) * m


# ---------------------------------------------------------------------------
# Pallas kernel
# ---------------------------------------------------------------------------
def _linear_kernel(x_ref, w_ref, b_ref, o_ref):
    # x: [tm, E] f32, w: [E, H] f32 (resident), b: [1, H] f32 (resident)
    # -> o: [tm, H] f32
    acc = jnp.dot(x_ref[...], w_ref[...], preferred_element_type=jnp.float32)
    o_ref[...] = (acc + b_ref[...]).astype(o_ref.dtype)


# ---------------------------------------------------------------------------
# Wrapper
# ---------------------------------------------------------------------------
def pallas_linear(x, w_t, b, *, tm):
    """y = x @ w_t + b.

    x: [N, E] f32 (unpadded), w_t: [E, H] f32, b: [1, H] f32 -> [N, H] f32.
    Ragged cdiv grid over rows; Pallas masks the partial tail block. Weight and
    bias stay resident in VMEM across all grid steps.
    """
    N, E = x.shape
    E2, H = w_t.shape
    assert E == E2 and b.shape == (1, H)
    assert tm % 8 == 0 and tm <= N

    cost = pl.CostEstimate(
        flops=2 * N * E * H,
        transcendentals=0,
        bytes_accessed=(x.size + w_t.size + b.size + N * H) * 4,
    )
    return pl.pallas_call(
        _linear_kernel,
        out_shape=jax.ShapeDtypeStruct((N, H), jnp.float32),
        grid_spec=pltpu.PrefetchScalarGridSpec(
            num_scalar_prefetch=0,
            grid=(pl.cdiv(N, tm),),
            in_specs=[
                # Minor dim == full array dim -> exempt from the 128 rule.
                pl.BlockSpec((tm, E), lambda i: (i, 0)),
                pl.BlockSpec((E, H), lambda i: (0, 0)),   # weight resident in VMEM
                pl.BlockSpec((1, H), lambda i: (0, 0)),   # bias resident in VMEM
            ],
            out_specs=pl.BlockSpec((tm, H), lambda i: (i, 0)),
        ),
        compiler_params=pltpu.CompilerParams(
            dimension_semantics=("parallel",),
        ),
        cost_estimate=cost,
    )(x, w_t, b)


# ---------------------------------------------------------------------------
# Module port
# ---------------------------------------------------------------------------
class NNCYKPreterminatePallas:
    # Row-tile cap: 2048 x 200 f32 x-tile (~1.6 MiB) + 2048 x 128 f32 out tile
    # (~1 MiB), double-buffered -> ~5 MiB, comfortably inside v7x's 32 MiB
    # scoped VMEM (and trivially inside v5e/v6e's 128 MiB).
    MAX_TM = 2048
    # Below this many rows, pallas_call launch overhead dwarfs the work.
    PALLAS_MIN_ROWS = 16

    def __init__(self, word_embedding_length=200, grammar_embedding_length=0,
                 output_feature_length=128, key=None):
        self.preterminate_grammar_feature_size = word_embedding_length
        self.grammar_embedding_size = grammar_embedding_length
        self.hidden_size = output_feature_length

        E, G, H = word_embedding_length, grammar_embedding_length, output_feature_length
        self.E, self.G, self.H = E, G, H

        if key is None:
            key = jax.random.PRNGKey(0)
        k1, k2, k3, k4 = jax.random.split(key, 4)

        # Deterministic init matching nn.Linear's U(-1/sqrt(fan_in), 1/sqrt(fan_in)).
        def init_linear(kw, kb, fan_in, fan_out):
            bound = 1.0 / jnp.sqrt(jnp.float32(max(fan_in, 1)))
            w = jax.random.uniform(kw, (fan_out, fan_in), jnp.float32, -bound, bound)
            b = jax.random.uniform(kb, (fan_out,), jnp.float32, -bound, bound)
            return w, b

        # Masters, PyTorch layout [out, in].
        self.w_with, self.b_with = init_linear(k1, k2, E + G, H)   # [H, E+G]
        self.w_no, self.b_no = init_linear(k3, k4, E, H)           # [H, E]

        # Kernel / fallback layouts (transposed, unpadded, f32).
        self.w_no_t = jnp.transpose(self.w_no)                     # [E, H]
        self.b_no_p = self.b_no[None, :]                           # [1, H]
        self.w_with_t = jnp.transpose(self.w_with)                 # [E+G, H]

    # -- helpers ----------------------------------------------------------
    def _row_tile(self, n):
        # >= 2 grid steps whenever n >= 16 so the "parallel" axis actually
        # shards across v7x's two TensorCores; capped by MAX_TM for large n.
        return min(self.MAX_TM, _round_up(pl.cdiv(n, 2), 8))

    # -- forward ----------------------------------------------------------
    def __call__(self, word_embedding, grammar_embedding=None):
        if (self.preterminate_grammar_feature_size == 0
                or self.grammar_embedding_size == 0):
            x = jnp.asarray(word_embedding, jnp.float32)
            if x.ndim == 1:
                # Single vector: launch-bound, let XLA fuse a plain dot.
                return x @ self.w_no_t + self.b_no
            N = x.shape[0]
            if N < self.PALLAS_MIN_ROWS:
                # Tiny batch: Pallas launch + DMA setup dwarfs the work.
                return x @ self.w_no_t + self.b_no
            return pallas_linear(x, self.w_no_t, self.b_no_p, tm=self._row_tile(N))

        # With-grammar path: torch.cat([word, grammar], dim=0) is only
        # shape-valid for 1-D inputs feeding Linear(E+G).  A single-vector
        # matmul is launch-bound, so Pallas is bypassed (per perf review).
        # TODO(synk): batched (2-D) grammar inputs would need a feature-axis
        # concat, which diverges from the torch dim-0 cat semantics; unsupported.
        w = jnp.asarray(word_embedding, jnp.float32)
        g = jnp.asarray(grammar_embedding, jnp.float32)
        assert w.ndim == 1 and g.ndim == 1, "with-grammar path supports 1-D inputs only"
        x = jnp.concatenate([w, g], axis=0)
        return x @ self.w_with_t + self.b_with


# ---------------------------------------------------------------------------
# Demo / self-check
# ---------------------------------------------------------------------------
if __name__ == "__main__":
    key = jax.random.PRNGKey(0)
    kparam, kx1, kx2, kx3, kw, kg = jax.random.split(key, 6)

    E, H = 200, 128

    # No-grammar config (default: grammar_embedding_length=0).
    model = NNCYKPreterminatePallas(word_embedding_length=E,
                                    grammar_embedding_length=0,
                                    output_feature_length=H, key=kparam)

    # (a) Batched with N not a multiple of the row tile -> Pallas path with a
    #     ragged cdiv grid (tm=24, grid=(2,), partial tail block).
    N = 40
    xb = jax.random.normal(kx1, (N, E), jnp.float32)
    out_b = jax.block_until_ready(model(xb))
    ref_b = xb @ model.w_no_t + model.b_no
    assert out_b.shape == (N, H)
    assert jnp.allclose(out_b, ref_b, atol=2e-2, rtol=2e-2), "pallas batched mismatch"

    # (b) Tiny batch -> jnp fallback (launch-bound regime).
    xs = jax.random.normal(kx2, (13, E), jnp.float32)
    out_s = jax.block_until_ready(model(xs))
    ref_s = xs @ model.w_no_t + model.b_no
    assert out_s.shape == (13, H)
    assert jnp.allclose(out_s, ref_s, atol=2e-2, rtol=2e-2), "small-batch mismatch"

    # (c) Single 1-D vector (squeeze handling).
    xv = jax.random.normal(kx3, (E,), jnp.float32)
    out_v = jax.block_until_ready(model(xv))
    ref_v = xv @ model.w_no_t + model.b_no
    assert out_v.shape == (H,)
    assert jnp.allclose(out_v, ref_v, atol=2e-2, rtol=2e-2), "vector mismatch"

    # With-grammar config: 1-D inputs, torch.cat(dim=0) semantics.
    G = 56
    model2 = NNCYKPreterminatePallas(word_embedding_length=E,
                                     grammar_embedding_length=G,
                                     output_feature_length=H, key=kparam)
    wv = jax.random.normal(kw, (E,), jnp.float32)
    gv = jax.random.normal(kg, (G,), jnp.float32)
    out_g = jax.block_until_ready(model2(wv, gv))
    ref_g = jnp.concatenate([wv, gv]) @ model2.w_with_t + model2.b_with
    assert out_g.shape == (H,)
    assert jnp.allclose(out_g, ref_g, atol=2e-2, rtol=2e-2), "with-grammar mismatch"

    print("KERNEL_OK")
</pallas_src>

<mosaic_0001>
module attributes {stable_mosaic.version = 11 : i64} {
  func.func @_linear_kernel(%arg0: i32, %arg1: memref<24x200xf32, #tpu.memory_space<vmem>>, %arg2: memref<200x128xf32, #tpu.memory_space<vmem>>, %arg3: memref<1x128xf32, #tpu.memory_space<vmem>>, %arg4: memref<24x128xf32, #tpu.memory_space<vmem>>) attributes {dimension_semantics = [#tpu.dimension_semantics<parallel>], iteration_bounds = array<i64: 2>, scalar_prefetch = 0 : i64, scratch_operands = 0 : i64, tpu.core_type = #tpu.core_type<tc>, window_params = [{transform_indices = @transform_0, window_bounds = array<i64: 24, 200>}, {pipeline_mode = #tpu.pipeline_mode<synchronous>, transform_indices = @transform_1, window_bounds = array<i64: 200, 128>}, {pipeline_mode = #tpu.pipeline_mode<synchronous>, transform_indices = @transform_2, window_bounds = array<i64: 1, 128>}, {transform_indices = @transform_3, window_bounds = array<i64: 24, 128>}]} {
    %c0 = arith.constant 0 : index
    %c0_0 = arith.constant 0 : index
    %0 = vector.load %arg1[%c0, %c0_0] : memref<24x200xf32, #tpu.memory_space<vmem>>, vector<24x200xf32>
    %c0_1 = arith.constant 0 : index
    %c0_2 = arith.constant 0 : index
    %1 = vector.load %arg2[%c0_1, %c0_2] : memref<200x128xf32, #tpu.memory_space<vmem>>, vector<200x128xf32>
    %cst = arith.constant dense<0.000000e+00> : vector<24x128xf32>
    %2 = tpu.matmul %0, %1, %cst {dimension_numbers = #tpu.dot_dimension_numbers<[1], [0], [0], [1], [0, 0, 1, 1], [], []>} : vector<24x200xf32>, vector<200x128xf32>, vector<24x128xf32> -> vector<24x128xf32>
    %c0_3 = arith.constant 0 : index
    %c0_4 = arith.constant 0 : index
    %3 = vector.load %arg3[%c0_3, %c0_4] : memref<1x128xf32, #tpu.memory_space<vmem>>, vector<1x128xf32>
    %4 = vector.broadcast %3 : vector<1x128xf32> to vector<24x128xf32>
    %5 = arith.addf %2, %4 : vector<24x128xf32>
    %c0_5 = arith.constant 0 : index
    %c0_6 = arith.constant 0 : index
    %6 = vector.load %arg4[%c0_5, %c0_6] : memref<24x128xf32, #tpu.memory_space<vmem>>, vector<24x128xf32>
    tpu.vector_store %arg4[%c0_5, %c0_6], %5 {strides = array<i32>} : memref<24x128xf32, #tpu.memory_space<vmem>>, vector<24x128xf32>,
    return
  }
  func.func @transform_0(%arg0: i32) -> (i32, i32) {
    %c0_i32 = arith.constant 0 : i32
    %c0_i32_0 = arith.constant 0 : i32
    return %arg0, %c0_i32 : i32, i32
  }
  func.func @transform_1(%arg0: i32) -> (i32, i32) {
    %c0_i32 = arith.constant 0 : i32
    %c0_i32_0 = arith.constant 0 : i32
    %c0_i32_1 = arith.constant 0 : i32
    return %c0_i32, %c0_i32_0 : i32, i32
  }
  func.func @transform_2(%arg0: i32) -> (i32, i32) {
    %c0_i32 = arith.constant 0 : i32
    %c0_i32_0 = arith.constant 0 : i32
    %c0_i32_1 = arith.constant 0 : i32
    return %c0_i32, %c0_i32_0 : i32, i32
  }
  func.func @transform_3(%arg0: i32) -> (i32, i32) {
    %c0_i32 = arith.constant 0 : i32
    %c0_i32_0 = arith.constant 0 : i32
    return %arg0, %c0_i32 : i32, i32
  }
}

</mosaic_0001>

<llo_original>
// kernel: tpu_custom_call.1
$region0: #{tpu_custom_call.1}
  #allocation0 [shape = 'u32[]', space=smem, size = 0x4, offset = 0x4, fixed_abs, tag = 'smem constant byte address 0x4 - core index']
  #allocation1 [shape = 'u32[144,128]{1,0:T(1,128)}', space=vmem, size = 0x12000, scoped, tag = 'internal scratch']
  %s0 = inlined_call_operand.hbm [shape: f32[40,200], index: 0, kind: input, shape index: {}]
  %s1 = inlined_call_operand.hbm [shape: f32[200,128], index: 1, kind: input, shape index: {}]
  %s2 = inlined_call_operand.vmem [shape: f32[1,128], index: 2, kind: input, shape index: {}]
  %s3 = inlined_call_operand.hbm [shape: f32[40,128], index: 3, kind: output, shape index: {}]
  %s4 = sld [smem:[#allocation0]]
  $region53: #{tpu_custom_call.1} parent=0
    _
  %s6 = ssub.s32 1, %s4
  %s7 = scalar_select 0, %s6, %s4
  $region1: #{tpu_custom_call.1} parent=0
    #allocation2 [shape = 'u8[49152]{0}', space=vmem, size = 0xc000, scoped, tag = 'input window, operand 0']
    #allocation3 [shape = 's32[2]{0}', space=sflag, size = 0x8, scoped, tag = 'scoped memory for tpu_custom_call.1']
    #allocation4 [shape = 's32[2]{0}', space=sflag, size = 0x8, scoped, tag = 'scoped memory for tpu_custom_call.1']
    #allocation5 [shape = 'u8[102400]{0}', space=vmem, size = 0x19000, scoped, tag = 'input window, operand 1, single buffered']
    #allocation6 [shape = 's32[1]{0}', space=sflag, size = 0x4, scoped, tag = 'scoped memory for tpu_custom_call.1']
    #allocation7 [shape = 'u8[24576]{0}', space=vmem, size = 0x6000, scoped, tag = 'output window, operand 0']
    %8 = vsyncpa [#allocation3], 0
    %s9 = scalar_lea.sflag [#allocation3], 1
    %10 = vsyncpa %s9, 0
    %11 = vsyncpa [#allocation6], 0
    %12 = vsyncpa [#allocation4], 0
    %s13 = scalar_lea.sflag [#allocation4], 1
    %14 = vsyncpa %s13, 0
    loop: start=0, step=1, limit=4
    $region2: #{tpu_custom_call.1} parent=1 // loop_pre_header
      _
    $region3: #{tpu_custom_call.1} parent=1 // loop_header
      %s16 = sphi 0, %s20
      %p17 = scmp.ge.s32.totalorder %s16, 4
      %s26 = sphi 0, %s28
      %s29 = sphi 0, %s26
      %s30 = sphi 0, %s29
      %s46 = sphi 0, %s30
      %s50 = sphi 0, %s50
      %s52 = sphi 0, %s50
      %s53 = sphi 0, %s52
      %s67 = sphi 0, %s53
      %s71 = sphi 0, %s71
      %s73 = sphi 0, %s71
      %s74 = sphi 0, %s73
      %s88 = sphi 0, %s74
      %s94 = sphi 0, %s96
      %s97 = sphi 0, %s94
      %s98 = sphi 0, %s97
      %s114 = sphi 0, %s98
    $region4: #{tpu_custom_call.1} parent=1 // loop_header_branch
      %19 = sbr.rel (%p17) target = $region8
    $region5: #{tpu_custom_call.1} parent=1 // loop_body
      %s21 = ssub.s32 %s16, 1
      %s22 = ssub.s32 %s16, 2
      %s23 = sadd.s32 %s16, 1
      %s24 = ssub.s32 %s16, %s23
      %p25 = scmp.eq.s32.totalorder %s24, 0
      %s27 = sadd.s32 %s26, 1
      %s28 = scalar_select %p25, %s26, %s27
      %p31 = pneg %p25
      %p32 = scmp.eq.s32.totalorder %s16, 1
      %p33 = por %p31, %p32
      %p34 = scmp.ne.s32.totalorder %s26, %s29
      %p35 = scmp.eq.s32.totalorder %s16, 0
      %p36 = por %p34, %p35
      %p37 = scmp.ne.s32.totalorder %s26, %s29
      %p38 = scmp.eq.s32.totalorder %s21, 1
      %p39 = por %p37, %p38
      %p40 = scmp.ne.s32.totalorder %s29, %s30
      %p41 = scmp.eq.s32.totalorder %s21, 0
      %p42 = por %p40, %p41
      %p43 = scmp.ne.s32.totalorder %s29, %s30
      %p44 = scmp.eq.s32.totalorder %s22, 1
      %p45 = por %p43, %p44
      %p47 = scmp.ne.s32.totalorder %s30, %s46
      %p48 = scmp.eq.s32.totalorder %s22, 0
      %p49 = por %p47, %p48
      %s51 = sadd.s32 %s50, 1
      %p54 = scmp.eq.s32.totalorder %s16, 1
      %p55 = scmp.ne.s32.totalorder %s50, %s52
      %p56 = scmp.eq.s32.totalorder %s16, 0
      %p57 = por %p55, %p56
      %p58 = scmp.ne.s32.totalorder %s50, %s52
      %p59 = scmp.eq.s32.totalorder %s21, 1
      %p60 = por %p58, %p59
      %p61 = scmp.ne.s32.totalorder %s52, %s53
      %p62 = scmp.eq.s32.totalorder %s21, 0
      %p63 = por %p61, %p62
      %p64 = scmp.ne.s32.totalorder %s52, %s53
      %p65 = scmp.eq.s32.totalorder %s22, 1
      %p66 = por %p64, %p65
      %p68 = scmp.ne.s32.totalorder %s53, %s67
      %p69 = scmp.eq.s32.totalorder %s22, 0
      %p70 = por %p68, %p69
      %s72 = sadd.s32 %s71, 1
      %p75 = scmp.eq.s32.totalorder %s16, 1
      %p76 = scmp.ne.s32.totalorder %s71, %s73
      %p77 = scmp.eq.s32.totalorder %s16, 0
      %p78 = por %p76, %p77
      %p79 = scmp.ne.s32.totalorder %s71, %s73
      %p80 = scmp.eq.s32.totalorder %s21, 1
      %p81 = por %p79, %p80
      %p82 = scmp.ne.s32.totalorder %s73, %s74
      %p83 = scmp.eq.s32.totalorder %s21, 0
      %p84 = por %p82, %p83
      %p85 = scmp.ne.s32.totalorder %s73, %s74
      %p86 = scmp.eq.s32.totalorder %s22, 1
      %p87 = por %p85, %p86
      %p89 = scmp.ne.s32.totalorder %s74, %s88
      %p90 = scmp.eq.s32.totalorder %s22, 0
      %p91 = por %p89, %p90
      %s92 = ssub.s32 %s16, %s23
      %p93 = scmp.eq.s32.totalorder %s92, 0
      %s95 = sadd.s32 %s94, 1
      %s96 = scalar_select %p93, %s94, %s95
      %p99 = pneg %p93
      %p100 = scmp.eq.s32.totalorder %s16, 1
      %p101 = por %p99, %p100
      %p102 = scmp.ne.s32.totalorder %s94, %s97
      %p103 = scmp.eq.s32.totalorder %s16, 0
      %p104 = por %p102, %p103
      %p105 = scmp.ne.s32.totalorder %s94, %s97
      %p106 = scmp.eq.s32.totalorder %s21, 1
      %p107 = por %p105, %p106
      %p108 = scmp.ne.s32.totalorder %s97, %s98
      %p109 = scmp.eq.s32.totalorder %s21, 0
      %p110 = por %p108, %p109
      %p111 = scmp.ne.s32.totalorder %s97, %s98
      %p112 = scmp.eq.s32.totalorder %s22, 1
      %p113 = por %p111, %p112
      %p115 = scmp.ne.s32.totalorder %s98, %s114
      %p116 = scmp.eq.s32.totalorder %s22, 0
      %p117 = por %p115, %p116
      %p118 = scmp.le.s32.totalorder 1, %s16
      %p119 = scmp.lt.s32.totalorder %s16, 3
      %p120 = pnand %p118, %p119
      %p121 = pneg %p120
      // Predicated region
      $region9: #{tpu_custom_call.1} parent=5 // pred_check
        _
      $region10: #{tpu_custom_call.1} parent=5 // pred_check_branch
        %123 = sbr.rel (%p120) target = $region12
      $region11: #{tpu_custom_call.1} parent=5 // pred_region
        %s124 = ssub.s32 %s16, 1
        // Predicated region
        $region13: #{tpu_custom_call.1} parent=11 // pred_check
          %p125 = pneg %p63
        $region14: #{tpu_custom_call.1} parent=11 // pred_check_branch
          %127 = sbr.rel (%p125) target = $region16
        $region15: #{tpu_custom_call.1} parent=11 // pred_region
          %s129 = ssub.s32 3200, 3200
          %130 = vsyncadd [#allocation6], %s129
          %s131 = sshll.u32 [#allocation5], 4
          %s132 = int_to_ptr.vmem [resolvable:$true] %s131
          %137 = dma.hbm_to_vmem [thread:$0]  %s1, 3200, %s132, [#allocation6], 128, 128, 8
        $region16: #{tpu_custom_call.1} parent=11 // pred_fallthru
          _
        // Predicated region
        $region17: #{tpu_custom_call.1} parent=11 // pred_check
          %p138 = pneg %p84
        $region18: #{tpu_custom_call.1} parent=11 // pred_check_branch
          %140 = sbr.rel (%p138) target = $region20
        $region19: #{tpu_custom_call.1} parent=11 // pred_region
          _
        $region20: #{tpu_custom_call.1} parent=11 // pred_fallthru
          _
      $region12: #{tpu_custom_call.1} parent=5 // pred_fallthru
        _
      %p141 = scmp.lt.s32.totalorder %s16, 2
      // Predicated region
      $region21: #{tpu_custom_call.1} parent=5 // pred_check
        %p142 = pneg %p141
      $region22: #{tpu_custom_call.1} parent=5 // pred_check_branch
        %144 = sbr.rel (%p142) target = $region24
      $region23: #{tpu_custom_call.1} parent=5 // pred_region
        // Predicated region
        $region25: #{tpu_custom_call.1} parent=23 // pred_check
          %p145 = pneg %p36
        $region26: #{tpu_custom_call.1} parent=23 // pred_check_branch
          %147 = sbr.rel (%p145) target = $region28
        $region27: #{tpu_custom_call.1} parent=23 // pred_region
          %s148 = sand.u32 %s26, 1
          %s149 = scalar_lea.sflag [#allocation3], %s148
          %s150 = sand.u32 %s26, 1
          %s151 = smul.addr %s150, 48
          %s152 = scalar_lea.vmem [#allocation2], %s151
          %s153 = smul.u32 3, %s16
          %s154 = ssub.s32 5, %s153
          %p155 = scmp.lt.s32.totalorder %s154, 3
          %s156 = scalar_select %p155, %s154, 3
          %s157 = smul.u32 128, %s156
          %s158 = smul.u32 %s157, 2
          %s160 = ssub.s32 768, %s158
          %161 = vsyncadd %s149, %s160
          %p162 = scmp.ne.s32.totalorder 0, %s158
          %s163 = smul.addr %s153, 2
          %s164 = smul.addr %s163, 128
          %s165 = scalar_lea.hbm %s0, %s164
          %s166 = smul.u32 16, %s156
          %s167 = sshll.u32 %s152, 4
          %s168 = int_to_ptr.vmem [resolvable:$true] %s167
          %s169 = sshll.u32 %s166, 4
          %173 = dma.hbm_to_vmem [thread:$0]  (%p162), %s165, %s169, %s168, %s149, 256, 256, 16
        $region28: #{tpu_custom_call.1} parent=23 // pred_fallthru
          _
      $region24: #{tpu_custom_call.1} parent=5 // pred_fallthru
        _
      %p174 = scmp.le.s32.totalorder 1, %s16
      %p175 = scmp.lt.s32.totalorder %s16, 3
      %p176 = pnand %p174, %p175
      %p177 = pneg %p176
      // Predicated region
      $region29: #{tpu_custom_call.1} parent=5 // pred_check
        _
      $region30: #{tpu_custom_call.1} parent=5 // pred_check_branch
        %179 = sbr.rel (%p176) target = $region32
      $region31: #{tpu_custom_call.1} parent=5 // pred_region
        %s180 = ssub.s32 %s16, 1
        %s181 = sand.u32 %s29, 1
        %s182 = scalar_lea.sflag [#allocation3], %s181
        %s183 = sand.u32 %s29, 1
        %s184 = smul.addr %s183, 48
        %s185 = scalar_lea.vmem [#allocation2], %s184
        // Predicated region
        $region33: #{tpu_custom_call.1} parent=31 // pred_check
          %p186 = pneg %p42
        $region34: #{tpu_custom_call.1} parent=31 // pred_check_branch
          %188 = sbr.rel (%p186) target = $region36
        $region35: #{tpu_custom_call.1} parent=31 // pred_region
          %189 = dma.done %s182, 768
        $region36: #{tpu_custom_call.1} parent=31 // pred_fallthru
          _
        // Predicated region
        $region37: #{tpu_custom_call.1} parent=31 // pred_check
          %p190 = pneg %p63
        $region38: #{tpu_custom_call.1} parent=31 // pred_check_branch
          %192 = sbr.rel (%p190) target = $region40
        $region39: #{tpu_custom_call.1} parent=31 // pred_region
          %193 = dma.done [#allocation6], 3200
        $region40: #{tpu_custom_call.1} parent=31 // pred_fallthru
          _
        %s194 = sand.u32 %s29, 1
        %s195 = scalar_lea.sflag [#allocation3], %s194
        %s196 = sand.u32 %s29, 1
        %s197 = smul.addr %s196, 48
        %s198 = scalar_lea.vmem [#allocation2], %s197
        %p199 = pneg %p42
        %p200 = pneg %p39
        %p201 = pneg %p63
        %p202 = pneg %p60
        %p203 = pneg %p84
        %p204 = pneg %p81
        %p205 = pneg %p110
        %p206 = pneg %p107
        %s207 = sand.u32 %s97, 1
        %s208 = scalar_lea.sflag [#allocation4], %s207
        %s209 = sand.u32 %s97, 1
        %s210 = smul.addr %s209, 24
        %s211 = scalar_lea.vmem [#allocation7], %s210
        %s212 = smul.u32 3, %s21
        %s213 = ssub.s32 5, %s212
        %p214 = scmp.lt.s32.totalorder %s213, 3
        %s215 = scalar_select %p214, %s213, 3
        %s216 = smul.u32 128, %s215
        %s217 = smul.u32 %s216, 2
        %s218 = smul.u32 3, %s21
        %s219 = ssub.s32 5, %s218
        %p220 = scmp.lt.s32.totalorder %s219, 3
        %s221 = scalar_select %p220, %s219, 3
        %s222 = smul.u32 128, %s221
        %v223 = vld [vmem:[%s185] sm:$0xff]
        %v224 = vld [vmem:[%s185 + $0x8] sm:$0xff]
        %v225 = vld [vmem:[%s185 + $0x10] sm:$0xff]
        %v226 = vld [vmem:[%s185 + $0x18] sm:$0xff]
        %v227 = vld [vmem:[%s185 + $0x20] sm:$0xff]
        %v228 = vld [vmem:[%s185 + $0x28] sm:$0xff]
        %v229 = vld [vmem:[#allocation5] sm:$0xff]
        %v230 = vld [vmem:[#allocation5 + $0x8] sm:$0xff]
        %v231 = vld [vmem:[#allocation5 + $0x10] sm:$0xff]
        %v232 = vld [vmem:[#allocation5 + $0x18] sm:$0xff]
        %v233 = vld [vmem:[#allocation5 + $0x20] sm:$0xff]
        %v234 = vld [vmem:[#allocation5 + $0x28] sm:$0xff]
        %v235 = vld [vmem:[#allocation5 + $0x30] sm:$0xff]
        %v236 = vld [vmem:[#allocation5 + $0x38] sm:$0xff]
        %v237 = vld [vmem:[#allocation5 + $0x40] sm:$0xff]
        %v238 = vld [vmem:[#allocation5 + $0x48] sm:$0xff]
        %v239 = vld [vmem:[#allocation5 + $0x50] sm:$0xff]
        %v240 = vld [vmem:[#allocation5 + $0x58] sm:$0xff]
        %v241 = vld [vmem:[#allocation5 + $0x60] sm:$0xff]
        %v242 = vld [vmem:[#allocation5 + $0x68] sm:$0xff]
        %v243 = vld [vmem:[#allocation5 + $0x70] sm:$0xff]
        %v244 = vld [vmem:[#allocation5 + $0x78] sm:$0xff]
        %v245 = vld [vmem:[#allocation5 + $0x80] sm:$0xff]
        %v246 = vld [vmem:[#allocation5 + $0x88] sm:$0xff]
        %v247 = vld [vmem:[#allocation5 + $0x90] sm:$0xff]
        %v248 = vld [vmem:[#allocation5 + $0x98] sm:$0xff]
        %v249 = vld [vmem:[#allocation5 + $0xa0] sm:$0xff]
        %v250 = vld [vmem:[#allocation5 + $0xa8] sm:$0xff]
        %v251 = vld [vmem:[#allocation5 + $0xb0] sm:$0xff]
        %v252 = vld [vmem:[#allocation5 + $0xb8] sm:$0xff]
        %v253 = vld [vmem:[#allocation5 + $0xc0] sm:$0xff]
        %v254 = vld [vmem:[%s2] sm:$0x1]
        %v256 = vlaneseq
        %v257 = vshrl.u32 %v256, 7
        %v258 = vsub.s32 0, %v257
        %v259 = vrot.slane %v254, %v258
        %vm261 = vcmask 588800
        %v263 = vsel %vm261, %v224, 0
        %v266 = vsel %vm261, %v226, 0
        %v269 = vsel %vm261, %v228, 0
        %271 = vmatprep.subr.mxu0 0.0
        %272 = vmatpush1.msra.mxu0 %v229
        %273 = vmatprep.subr.mxu0 0.0
        %274 = vmatpush1.msra.mxu0 %v230
        %275 = vmatprep.subr.mxu0 0.0
        %276 = vmatpush1.msra.mxu0 %v231
        %277 = vmatprep.subr.mxu0 0.0
        %278 = vmatpush1.msra.mxu0 %v232
        %279 = vmatprep.subr.mxu0 0.0
        %280 = vmatpush1.msra.mxu0 %v233
        %281 = vmatprep.subr.mxu0 0.0
        %282 = vmatpush1.msra.mxu0 %v234
        %283 = vmatprep.subr.mxu0 0.0
        %284 = vmatpush1.msra.mxu0 %v235
        %285 = vmatprep.subr.mxu0 0.0
        %286 = vmatpush1.msra.mxu0 %v236
        %287 = vmatprep.subr.mxu0 0.0
        %288 = vmatpush1.msra.mxu0 %v237
        %289 = vmatprep.subr.mxu0 0.0
        %290 = vmatpush1.msra.mxu0 %v238
        %291 = vmatprep.subr.mxu0 0.0
        %292 = vmatpush1.msra.mxu0 %v239
        %293 = vmatprep.subr.mxu0 0.0
        %294 = vmatpush1.msra.mxu0 %v240
        %295 = vmatprep.subr.mxu0 0.0
        %296 = vmatpush1.msra.mxu0 %v241
        %297 = vmatprep.subr.mxu0 0.0
        %298 = vmatpush1.msra.mxu0 %v242
        %299 = vmatprep.subr.mxu0 0.0
        %300 = vmatpush1.msra.mxu0 %v243
        %301 = vmatprep.subr.mxu0 0.0
        %302 = vmatpush1.msra.mxu0 %v244
        %303 = vmatprep.subr.mxu0 0.0
        %304 = vmatpush1.msra.mxu0 %v245
        %305 = vmatprep.subr.mxu0 0.0
        %306 = vmatpush1.msra.mxu0 %v246
        %307 = vmatprep.subr.mxu0 0.0
        %308 = vmatpush1.msra.mxu0 %v247
        %309 = vmatprep.subr.mxu0 0.0
        %310 = vmatpush1.msra.mxu0 %v248
        %311 = vmatprep.subr.mxu0 0.0
        %312 = vmatpush1.msra.mxu0 %v249
        %313 = vmatprep.subr.mxu0 0.0
        %314 = vmatpush1.msra.mxu0 %v250
        %315 = vmatprep.subr.mxu0 0.0
        %316 = vmatpush1.msra.mxu0 %v251
        %317 = vmatprep.subr.mxu0 0.0
        %318 = vmatpush1.msra.mxu0 %v252
        %319 = vmatprep.subr.mxu0 0.0
        %320 = vmatpush1.msra.mxu0 %v253
        %321 = vmatprep.subr.mxu0 0.0
        %322 = vmatpush1.msra.mxu0 0.0
        %323 = vmatprep.subr.mxu0 0.0
        %324 = vmatpush1.msra.mxu0 0.0
        %325 = vmatprep.subr.mxu0 0.0
        %326 = vmatpush1.msra.mxu0 0.0
        %327 = vmatprep.subr.mxu0 0.0
        %328 = vmatpush1.msra.mxu0 0.0
        %329 = vmatprep.subr.mxu0 0.0
        %330 = vmatpush1.msra.mxu0 0.0
        %331 = vmatprep.subr.mxu0 0.0
        %332 = vmatpush1.msra.mxu0 0.0
        %333 = vmatprep.subr.mxu0 0.0
        %334 = vmatpush1.msra.mxu0 0.0
        %335 = vmatprep.mubr.f32.mxu0 %v263
        %336 = vmatmul.mubr.f32.gmra.mrb[0].mxu0 %v223
        %v337 = vpop.f32.mrb[0].mxu0
        %v338 = vadd.f32 %v259, %v337
        %v339 = vpop.f32.mrb[0].mxu0
        %340 = vmatprep.mubr.f32.mxu0 %v266
        %341 = vmatmul.mubr.f32.gmra.mrb[0].mxu0 %v225
        %v342 = vpop.f32.mrb[0].mxu0
        %v343 = vadd.f32 %v259, %v342
        %v344 = vpop.f32.mrb[0].mxu0
        %345 = vmatprep.mubr.f32.mxu0 %v269
        %346 = vmatmul.mubr.f32.gmra.mrb[0].mxu0 %v227
        %v347 = vpop.f32.mrb[0].mxu0
        %v348 = vadd.f32 %v259, %v347
        %v349 = vpop.f32.mrb[0].mxu0
        %350 = vdwg.mxu0
        %351 = vst [vmem:[%s211] sm:$0xff] %v338
        %352 = vst [vmem:[%s211 + $0x8] sm:$0xff] %v343
        %353 = vst [vmem:[%s211 + $0x10] sm:$0xff] %v348
        %s354 = sand.u32 %s97, 1
        %s355 = scalar_lea.sflag [#allocation4], %s354
        %s356 = sand.u32 %s97, 1
        %s357 = smul.addr %s356, 24
        %s358 = scalar_lea.vmem [#allocation7], %s357
        // Predicated region
        $region41: #{tpu_custom_call.1} parent=31 // pred_check
          %p359 = pneg %p107
        $region42: #{tpu_custom_call.1} parent=31 // pred_check_branch
          %361 = sbr.rel (%p359) target = $region44
        $region43: #{tpu_custom_call.1} parent=31 // pred_region
          %s362 = smul.u32 3, %s21
          %s363 = ssub.s32 5, %s362
          %p364 = scmp.lt.s32.totalorder %s363, 3
          %s365 = scalar_select %p364, %s363, 3
          %s366 = smul.u32 128, %s365
          %s368 = ssub.s32 384, %s366
          %369 = vsyncadd %s355, %s368
          %p370 = scmp.ne.s32.totalorder 0, %s366
          %s371 = smul.addr %s362, 128
          %s372 = scalar_lea.hbm %s3, %s371
          %s373 = smul.u32 8, %s365
          %s374 = sshll.u32 %s358, 4
          %s375 = int_to_ptr.vmem [resolvable:$true] %s374
          %s376 = sshll.u32 %s373, 4
          %380 = dma.vmem_to_hbm [thread:$0]  (%p370), %s375, %s376, %s372, %s355, 128, 128, 8
        $region44: #{tpu_custom_call.1} parent=31 // pred_fallthru
          _
      $region32: #{tpu_custom_call.1} parent=5 // pred_fallthru
        _
      %p381 = scmp.le.s32.totalorder 2, %s16
      // Predicated region
      $region45: #{tpu_custom_call.1} parent=5 // pred_check
        %p382 = pneg %p381
      $region46: #{tpu_custom_call.1} parent=5 // pred_check_branch
        %384 = sbr.rel (%p382) target = $region48
      $region47: #{tpu_custom_call.1} parent=5 // pred_region
        %s385 = ssub.s32 %s16, 2
        // Predicated region
        $region49: #{tpu_custom_call.1} parent=47 // pred_check
          %p386 = pneg %p113
        $region50: #{tpu_custom_call.1} parent=47 // pred_check_branch
          %388 = sbr.rel (%p386) target = $region52
        $region51: #{tpu_custom_call.1} parent=47 // pred_region
          %s389 = sand.u32 %s98, 1
          %s390 = scalar_lea.sflag [#allocation4], %s389
          %s391 = sand.u32 %s98, 1
          %s392 = smul.addr %s391, 24
          %s393 = scalar_lea.vmem [#allocation7], %s392
          %394 = dma.done %s390, 384
        $region52: #{tpu_custom_call.1} parent=47 // pred_fallthru
          _
      $region48: #{tpu_custom_call.1} parent=5 // pred_fallthru
        _
    $region6: #{tpu_custom_call.1} parent=1 // loop_footer
      %s20 = sadd.s32 1, %s16
    $region7: #{tpu_custom_call.1} parent=1 // loop_footer_branch
      %15 = sbr.rel target = $region3
    $region8: #{tpu_custom_call.1} parent=1 // loop_exit
      _
    %395 = vsyncpa [#allocation3], 1
    %s396 = scalar_lea.sflag [#allocation3], 1
    %397 = vsyncpa %s396, 1
    %398 = vsyncpa [#allocation6], 1
    %399 = vsyncpa [#allocation4], 1
    %s400 = scalar_lea.sflag [#allocation4], 1
    %401 = vsyncpa %s400, 1

</llo_original>
